<compile_context>
chip_gen: v7x
topology: tpu7x:2x2x1
jax: 0.10.0
libtpu: 0.0.40
codegen_flags: <defaults>
</compile_context>

<pallas_src>
import functools
import jax
import jax.numpy as jnp
from jax.experimental import pallas as pl
from jax.experimental.pallas import tpu as pltpu


_OUT_SUB, _OUT_LANE = 8, 128     # lane-dense per-split partial-sum output slab


def _round_up(x, m):
    return ((x + m - 1) // m) * m


def _hw_params():
    """Generation-aware core split / VMEM limit / per-block byte budget."""
    try:
        kind = jax.devices()[0].device_kind.lower()
    except Exception:
        kind = ""
    mib = 1024 * 1024
    if "v7" in kind or "7x" in kind:          # 2 TCs, 64 MiB VMEM
        return {"splits": 2, "vmem_limit": 48 * mib, "block_budget": 6 * mib}
    if "v6" in kind or "v5p" in kind:         # 128 MiB VMEM
        return {"splits": 1, "vmem_limit": 64 * mib, "block_budget": 8 * mib}
    if "v5" in kind:                          # v5e: 128 MiB physical, 16 MiB scoped default
        return {"splits": 1, "vmem_limit": 64 * mib, "block_budget": 6 * mib}
    return {"splits": 1, "vmem_limit": None, "block_budget": 2 * mib}


def _compiler_params(dim_sem, vmem_limit):
    kwargs = {"dimension_semantics": dim_sem}
    if vmem_limit is not None:
        kwargs["vmem_limit_bytes"] = vmem_limit
    return pltpu.CompilerParams(**kwargs)


def _pick_tile_n(n, d, itemsize, budget_bytes):
    """Largest row tile (multiple of 8) whose block stays within budget_bytes."""
    rows = max(8, (budget_bytes // max(1, itemsize * d)) // 8 * 8)
    return int(min(rows, _round_up(max(n, 1), 8)))


def _scalar_slab(value):
    """Place a scalar at [0, 0] of an (8, 128) slab (rest zeros)."""
    r = jax.lax.broadcasted_iota(jnp.int32, (_OUT_SUB, _OUT_LANE), 0)
    c = jax.lax.broadcasted_iota(jnp.int32, (_OUT_SUB, _OUT_LANE), 1)
    return jnp.where(jnp.logical_and(r == 0, c == 0), value, 0.0)


def _split_layout(n, tile_n, want_splits):
    """Return (splits, steps_per_core, last_block) for a row-tiled reduction."""
    total_blocks = pl.cdiv(n, tile_n)
    splits = max(1, min(want_splits, total_blocks))
    steps_per_core = pl.cdiv(total_blocks, splits)
    return splits, steps_per_core, total_blocks - 1


def _row_map(splits, steps_per_core, last_block):
    """Block index map for the row axis; clamp so no DMA is fully OOB."""
    if splits == 1:
        return lambda c, j: (j, 0)
    return lambda c, j: (jnp.minimum(c * steps_per_core + j, last_block), 0)


# --------------------------------------------------------------------------
# L2_norm: (x1 - x2).norm(p=2)  == sqrt(sum of squared differences)
# --------------------------------------------------------------------------
def _l2_kernel(x1_ref, x2_ref, out_ref, *, n_valid, tile_n, steps_per_core):
    c = pl.program_id(0)
    j = pl.program_id(1)

    @pl.when(j == 0)
    def _():
        out_ref[...] = jnp.zeros_like(out_ref)

    a = x1_ref[...].astype(jnp.float32)
    b = x2_ref[...].astype(jnp.float32)
    diff = a - b
    rowsum = jnp.sum(diff * diff, axis=-1, keepdims=True)            # (tile_n, 1)
    row0 = (c * steps_per_core + j) * tile_n                          # logical (unclamped)
    rid = row0 + jax.lax.broadcasted_iota(jnp.int32, rowsum.shape, 0)
    partial = jnp.sum(jnp.where(rid < n_valid, rowsum, 0.0))
    out_ref[...] += _scalar_slab(partial)


def l2_norm_pallas(x1, x2):
    hw = _hw_params()
    d_last = x1.shape[-1]
    x1 = jnp.asarray(x1).reshape(-1, d_last)
    x2 = jnp.asarray(x2).reshape(-1, d_last)
    n, d = x1.shape
    itemsize = max(x1.dtype.itemsize, x2.dtype.itemsize)
    tile_n = _pick_tile_n(n, d, itemsize, hw["block_budget"])
    splits, spc, last_block = _split_layout(n, tile_n, hw["splits"])
    row_map = _row_map(splits, spc, last_block)

    kernel = functools.partial(_l2_kernel, n_valid=n, tile_n=tile_n, steps_per_core=spc)
    out = pl.pallas_call(
        kernel,
        out_shape=jax.ShapeDtypeStruct((splits * _OUT_SUB, _OUT_LANE), jnp.float32),
        grid_spec=pltpu.PrefetchScalarGridSpec(
            num_scalar_prefetch=0,
            grid=(splits, spc),
            in_specs=[pl.BlockSpec((tile_n, d), row_map),
                      pl.BlockSpec((tile_n, d), row_map)],
            out_specs=pl.BlockSpec((_OUT_SUB, _OUT_LANE), lambda c, j: (c, 0)),
        ),
        compiler_params=_compiler_params(("parallel", "arbitrary"), hw["vmem_limit"]),
    )(x1, x2)
    return jnp.sqrt(jnp.sum(out))


# --------------------------------------------------------------------------
# cosine: 1 - mean(cosine_similarity(x1, x2, dim=-1))
# --------------------------------------------------------------------------
def _cosine_kernel(x1_ref, x2_ref, out_ref, *, n_valid, tile_n, steps_per_core):
    c = pl.program_id(0)
    j = pl.program_id(1)

    @pl.when(j == 0)
    def _():
        out_ref[...] = jnp.zeros_like(out_ref)

    a = x1_ref[...].astype(jnp.float32)
    b = x2_ref[...].astype(jnp.float32)
    dot = jnp.sum(a * b, axis=-1, keepdims=True)
    n1 = jnp.sqrt(jnp.sum(a * a, axis=-1, keepdims=True))
    n2 = jnp.sqrt(jnp.sum(b * b, axis=-1, keepdims=True))
    cos = dot / jnp.maximum(n1 * n2, 1e-8)
    row0 = (c * steps_per_core + j) * tile_n
    rid = row0 + jax.lax.broadcasted_iota(jnp.int32, cos.shape, 0)
    partial = jnp.sum(jnp.where(rid < n_valid, cos, 0.0))
    out_ref[...] += _scalar_slab(partial)


def cosine_pallas(x1, x2):
    hw = _hw_params()
    d_last = x1.shape[-1]
    x1 = jnp.asarray(x1).reshape(-1, d_last)
    x2 = jnp.asarray(x2).reshape(-1, d_last)
    n, d = x1.shape
    itemsize = max(x1.dtype.itemsize, x2.dtype.itemsize)
    tile_n = _pick_tile_n(n, d, itemsize, hw["block_budget"])
    splits, spc, last_block = _split_layout(n, tile_n, hw["splits"])
    row_map = _row_map(splits, spc, last_block)

    kernel = functools.partial(_cosine_kernel, n_valid=n, tile_n=tile_n, steps_per_core=spc)
    out = pl.pallas_call(
        kernel,
        out_shape=jax.ShapeDtypeStruct((splits * _OUT_SUB, _OUT_LANE), jnp.float32),
        grid_spec=pltpu.PrefetchScalarGridSpec(
            num_scalar_prefetch=0,
            grid=(splits, spc),
            in_specs=[pl.BlockSpec((tile_n, d), row_map),
                      pl.BlockSpec((tile_n, d), row_map)],
            out_specs=pl.BlockSpec((_OUT_SUB, _OUT_LANE), lambda c, j: (c, 0)),
        ),
        compiler_params=_compiler_params(("parallel", "arbitrary"), hw["vmem_limit"]),
    )(x1, x2)
    return 1.0 - jnp.sum(out) * (1.0 / n)


# --------------------------------------------------------------------------
# SupCon: SupConLoss(contrast_mode='all', base_temperature=0.07) applied to
#         normalize(cat([f1, f2]))[:, None, :] with labels cat([l1, l2]).
#         (n_views = 1 => anchor_count = contrast_count = 1)
# Streaming (online-softmax) formulation over contrast chunks:
#   log_prob_ij = s_ij - LSE_i      (masked LSE over non-self valid columns)
#   mean_log_prob_pos_i = (sum_j pos_ij*s_ij - cnt_i*LSE_i) / max(cnt_i, 1)
# --------------------------------------------------------------------------
def _supcon_kernel(a_ref, kT_ref, la_ref, lc_ref, out_ref,
                   m_ref, l_ref, pdot_ref, pcnt_ref, *,
                   n_valid, tile_n, tile_k, steps_per_core, inv_temp, loss_scale):
    c = pl.program_id(0)
    j = pl.program_id(1)
    kk = pl.program_id(2)
    n_k = pl.num_programs(2)

    @pl.when(jnp.logical_and(j == 0, kk == 0))
    def _():
        out_ref[...] = jnp.zeros_like(out_ref)

    @pl.when(kk == 0)
    def _():
        m_ref[...] = jnp.full_like(m_ref, -1e30)
        l_ref[...] = jnp.zeros_like(l_ref)
        pdot_ref[...] = jnp.zeros_like(pdot_ref)
        pcnt_ref[...] = jnp.zeros_like(pcnt_ref)

    # (tile_n, tile_k) similarity logits on the MXU, native (M,K)@(K,N) shape.
    s = jnp.dot(a_ref[...], kT_ref[...], preferred_element_type=jnp.float32) * inv_temp

    row0 = (c * steps_per_core + j) * tile_n
    col0 = kk * tile_k
    rid = row0 + jax.lax.broadcasted_iota(jnp.int32, (tile_n, 1), 0)   # (tile_n, 1)
    cid = col0 + jax.lax.broadcasted_iota(jnp.int32, (1, tile_k), 1)   # (1, tile_k)
    col_valid = cid < n_valid                                          # (1, tile_k)
    lmask = jnp.logical_and(col_valid, rid != cid)                     # drop self + padding

    # online softmax denominator (max tracked over all valid cols, incl. self,
    # exactly like the PyTorch reference; the max cancels in the final loss).
    s_max = jnp.max(jnp.where(col_valid, s, -1e30), axis=-1, keepdims=True)
    m_new = jnp.maximum(m_ref[...], s_max)
    alpha = jnp.exp(m_ref[...] - m_new)
    p = jnp.where(lmask, jnp.exp(s - m_new), 0.0)
    l_ref[...] = alpha * l_ref[...] + jnp.sum(p, axis=-1, keepdims=True)
    m_ref[...] = m_new

    pos = jnp.logical_and(la_ref[...] == lc_ref[...], lmask)
    pdot_ref[...] += jnp.sum(jnp.where(pos, s, 0.0), axis=-1, keepdims=True)
    pcnt_ref[...] += jnp.sum(jnp.where(pos, 1.0, 0.0), axis=-1, keepdims=True)

    @pl.when(kk == n_k - 1)
    def _():
        lse = jnp.log(l_ref[...]) + m_ref[...]                         # (tile_n, 1)
        cnt = pcnt_ref[...]
        denom = jnp.where(cnt == 0.0, 1.0, cnt)
        mean_log_prob_pos = (pdot_ref[...] - cnt * lse) / denom
        loss_rows = loss_scale * mean_log_prob_pos
        loss_rows = jnp.where(rid < n_valid, loss_rows, 0.0)
        out_ref[...] += _scalar_slab(jnp.sum(loss_rows))


def supcon_pallas(feature1, feature2, label1, label2,
                  temperature=0.07, base_temperature=0.07):
    hw = _hw_params()
    f = jnp.concatenate([jnp.asarray(feature1), jnp.asarray(feature2)], axis=0)
    f = f.reshape(f.shape[0], -1).astype(jnp.float32)
    labels = jnp.concatenate([jnp.asarray(label1), jnp.asarray(label2)],
                             axis=0).astype(jnp.int32)
    n, d = f.shape

    # Normalize ONCE (PyTorch F.normalize, eps=1e-12); pre-transpose the
    # contrast operand so the in-kernel matmul is MXU-native (M,K)@(K,N).
    fn = f * (1.0 / jnp.maximum(jnp.sqrt(jnp.sum(f * f, axis=1, keepdims=True)), 1e-12))
    fnT = fn.T                                    # (d, n), lane-dense contrast
    labels_col = labels.reshape(n, 1)
    labels_row = labels.reshape(1, n)

    tile_n = min(256, _round_up(n, 8))
    tile_k = min(512 if d <= 2048 else 256, _round_up(n, 128))
    splits, spc, last_block = _split_layout(n, tile_n, hw["splits"])
    n_k = pl.cdiv(n, tile_k)

    if splits == 1:
        def a_map(c, j, kk): return (j, 0)
    else:
        def a_map(c, j, kk): return (jnp.minimum(c * spc + j, last_block), 0)

    kernel = functools.partial(
        _supcon_kernel, n_valid=n, tile_n=tile_n, tile_k=tile_k,
        steps_per_core=spc, inv_temp=float(1.0 / temperature),
        loss_scale=float(-(temperature / base_temperature)))

    out = pl.pallas_call(
        kernel,
        out_shape=jax.ShapeDtypeStruct((splits * _OUT_SUB, _OUT_LANE), jnp.float32),
        grid_spec=pltpu.PrefetchScalarGridSpec(
            num_scalar_prefetch=0,
            grid=(splits, spc, n_k),
            in_specs=[
                pl.BlockSpec((tile_n, d), a_map),                      # anchor tile
                pl.BlockSpec((d, tile_k), lambda c, j, kk: (0, kk)),   # contrast chunk (D, tile_k)
                pl.BlockSpec((tile_n, 1), a_map),                      # anchor labels
                pl.BlockSpec((1, tile_k), lambda c, j, kk: (0, kk)),   # contrast labels
            ],
            out_specs=pl.BlockSpec((_OUT_SUB, _OUT_LANE), lambda c, j, kk: (c, 0)),
            scratch_shapes=[pltpu.VMEM((tile_n, 1), jnp.float32),      # running max
                            pltpu.VMEM((tile_n, 1), jnp.float32),      # running denom
                            pltpu.VMEM((tile_n, 1), jnp.float32),      # sum pos*s
                            pltpu.VMEM((tile_n, 1), jnp.float32)],     # pos count
        ),
        compiler_params=_compiler_params(("parallel", "arbitrary", "arbitrary"),
                                         hw["vmem_limit"]),
    )(fn, fnT, labels_col, labels_row)
    return jnp.sum(out) * (1.0 / n)


# --------------------------------------------------------------------------
# Distance_loss forward dispatcher (matches the PyTorch module semantics)
# --------------------------------------------------------------------------
class DistanceLoss:
    def __init__(self, distance):
        self.distance = distance

    def __call__(self, x1, x2, label1=None, label2=None):
        if self.distance == 'L2_norm':
            return l2_norm_pallas(x1, x2)
        elif self.distance == 'cosine':
            return cosine_pallas(x1, x2)
        elif self.distance == 'SupCon':
            return supcon_pallas(x1, x2, label1, label2,
                                 temperature=0.07, base_temperature=0.07)
        elif self.distance == 'OT':
            # TODO(synk): sinkhorn_loss_joint_IPOT is not defined in the reference module
            # (and the original forward discards its result), so OT is not translated.
            raise NotImplementedError("OT distance not available")
        else:
            raise NotImplementedError(self.distance)


# --------------------------------------------------------------------------
# Pure-JAX references (mirror the PyTorch ops) for validation
# --------------------------------------------------------------------------
def l2_norm_ref(x1, x2):
    d = (jnp.asarray(x1) - jnp.asarray(x2)).astype(jnp.float32)
    return jnp.sqrt(jnp.sum(d * d))


def cosine_ref(x1, x2):
    x1 = jnp.asarray(x1).astype(jnp.float32)
    x2 = jnp.asarray(x2).astype(jnp.float32)
    dot = jnp.sum(x1 * x2, axis=-1)
    n1 = jnp.sqrt(jnp.sum(x1 * x1, axis=-1))
    n2 = jnp.sqrt(jnp.sum(x2 * x2, axis=-1))
    cos = dot / jnp.maximum(n1 * n2, 1e-8)
    return 1.0 - jnp.mean(cos)


def supcon_ref(f1, f2, l1, l2, temperature=0.07, base_temperature=0.07):
    f = jnp.concatenate([f1, f2], 0).astype(jnp.float32)
    f = f.reshape(f.shape[0], -1)
    f = f / jnp.maximum(jnp.sqrt(jnp.sum(f * f, axis=1, keepdims=True)), 1e-12)
    labels = jnp.concatenate([l1, l2], 0)
    n = f.shape[0]
    s = jnp.einsum('id,jd->ij', f, f, precision=jax.lax.Precision.HIGHEST) / temperature
    logits = s - jnp.max(s, axis=1, keepdims=True)
    logits_mask = 1.0 - jnp.eye(n, dtype=jnp.float32)
    mask = (labels[:, None] == labels[None, :]).astype(jnp.float32) * logits_mask
    exp_logits = jnp.exp(logits) * logits_mask
    log_prob = logits - jnp.log(jnp.sum(exp_logits, axis=1, keepdims=True))
    mask_sum = jnp.sum(mask, axis=1)
    mask_sum = jnp.where(mask_sum == 0.0, 1.0, mask_sum)
    mean_log_prob_pos = jnp.sum(mask * log_prob, axis=1) / mask_sum
    loss = -(temperature / base_temperature) * mean_log_prob_pos
    return jnp.mean(loss)


if __name__ == "__main__":
    key = jax.random.PRNGKey(0)
    k1, k2, k3, k4, k5, k6, k7, k8 = jax.random.split(key, 8)

    # ---- small case (shapes consistent with the module's forward) ----
    B, D, n_classes = 8, 32, 4
    x1 = jax.random.normal(k1, (B, D), dtype=jnp.float32)
    x2 = jax.random.normal(k2, (B, D), dtype=jnp.float32)
    l1 = jax.random.randint(k3, (B,), 0, n_classes, dtype=jnp.int32)
    l2 = jax.random.randint(k4, (B,), 0, n_classes, dtype=jnp.int32)

    out = jax.block_until_ready(DistanceLoss('L2_norm')(x1, x2))
    ref = l2_norm_ref(x1, x2)
    assert jnp.allclose(out, ref, rtol=1e-5, atol=1e-5), ("L2 small", out, ref)

    out = jax.block_until_ready(DistanceLoss('cosine')(x1, x2))
    ref = cosine_ref(x1, x2)
    assert jnp.allclose(out, ref, rtol=1e-5, atol=1e-5), ("cosine small", out, ref)

    out = jax.block_until_ready(DistanceLoss('SupCon')(x1, x2, l1, l2))
    ref = supcon_ref(x1, x2, l1, l2)
    assert jnp.allclose(out, ref, rtol=5e-3, atol=5e-3), ("SupCon small", out, ref)

    # ---- ragged / multi-tile case (exercises masking + streaming softmax) ----
    y1 = jax.random.normal(k5, (3, 100, 96), dtype=jnp.float32)
    y2 = jax.random.normal(k6, (3, 100, 96), dtype=jnp.float32)

    out = jax.block_until_ready(DistanceLoss('L2_norm')(y1, y2))
    ref = l2_norm_ref(y1, y2)
    assert jnp.allclose(out, ref, rtol=1e-5, atol=1e-5), ("L2 ragged", out, ref)

    out = jax.block_until_ready(DistanceLoss('cosine')(y1, y2))
    ref = cosine_ref(y1, y2)
    assert jnp.allclose(out, ref, rtol=1e-5, atol=1e-5), ("cosine ragged", out, ref)

    Bn, Dn = 300, 48     # N = 600 -> multiple anchor tiles + 2 contrast chunks
    f1 = jax.random.normal(k7, (Bn, Dn), dtype=jnp.float32)
    f2 = jax.random.normal(k8, (Bn, Dn), dtype=jnp.float32)
    la = jax.random.randint(k3, (Bn,), 0, n_classes, dtype=jnp.int32)
    lb = jax.random.randint(k4, (Bn,), 0, n_classes, dtype=jnp.int32)
    out = jax.block_until_ready(DistanceLoss('SupCon')(f1, f2, la, lb))
    ref = supcon_ref(f1, f2, la, lb)
    assert jnp.allclose(out, ref, rtol=5e-3, atol=5e-3), ("SupCon ragged", out, ref)

    print("KERNEL_OK")
</pallas_src>

<mosaic_0001>
module attributes {stable_mosaic.version = 11 : i64} {
  func.func @_l2_kernel(%arg0: i32, %arg1: i32, %arg2: memref<8x32xf32, #tpu.memory_space<vmem>>, %arg3: memref<8x32xf32, #tpu.memory_space<vmem>>, %arg4: memref<8x128xf32, #tpu.memory_space<vmem>>) attributes {dimension_semantics = [#tpu.dimension_semantics<parallel>, #tpu.dimension_semantics<arbitrary>], iteration_bounds = array<i64: 1, 1>, scalar_prefetch = 0 : i64, scratch_operands = 0 : i64, tpu.core_type = #tpu.core_type<tc>, window_params = [{transform_indices = @transform_0, window_bounds = array<i64: 8, 32>}, {transform_indices = @transform_1, window_bounds = array<i64: 8, 32>}, {transform_indices = @transform_2, window_bounds = array<i64: 8, 128>}]} {
    %c0_i32 = arith.constant 0 : i32
    %0 = arith.cmpi eq, %arg1, %c0_i32 : i32
    %1 = arith.extui %0 : i1 to i32
    %c0_i32_0 = arith.constant 0 : i32
    %2 = arith.cmpi ne, %1, %c0_i32_0 : i32
    scf.if %2 {
      %cst_14 = arith.constant 0.000000e+00 : f32
      %36 = vector.broadcast %cst_14 : f32 to vector<8x128xf32>
      %c0_15 = arith.constant 0 : index
      %c0_16 = arith.constant 0 : index
      %37 = vector.load %arg4[%c0_15, %c0_16] : memref<8x128xf32, #tpu.memory_space<vmem>>, vector<8x128xf32>
      tpu.vector_store %arg4[%c0_15, %c0_16], %36 {strides = array<i32>} : memref<8x128xf32, #tpu.memory_space<vmem>>, vector<8x128xf32>,
    } else {
    }
    %c0 = arith.constant 0 : index
    %c0_1 = arith.constant 0 : index
    %3 = vector.load %arg2[%c0, %c0_1] : memref<8x32xf32, #tpu.memory_space<vmem>>, vector<8x32xf32>
    %c0_2 = arith.constant 0 : index
    %c0_3 = arith.constant 0 : index
    %4 = vector.load %arg3[%c0_2, %c0_3] : memref<8x32xf32, #tpu.memory_space<vmem>>, vector<8x32xf32>
    %5 = arith.subf %3, %4 : vector<8x32xf32>
    %6 = arith.mulf %5, %5 : vector<8x32xf32>
    %cst = arith.constant dense<0.000000e+00> : vector<8xf32>
    %7 = vector.multi_reduction <add>, %6, %cst [1] : vector<8x32xf32> to vector<8xf32>
    %8 = vector.shape_cast %7 : vector<8xf32> to vector<8x1xf32>
    %c1_i32 = arith.constant 1 : i32
    %9 = arith.muli %arg0, %c1_i32 : i32
    %10 = arith.addi %9, %arg1 : i32
    %c8_i32 = arith.constant 8 : i32
    %11 = arith.muli %10, %c8_i32 : i32
    %12 = tpu.iota {dimensions = array<i32: 0>} : vector<8x1xi32>
    %13 = vector.broadcast %11 : i32 to vector<8x1xi32>
    %14 = arith.addi %13, %12 : vector<8x1xi32>
    %c8_i32_4 = arith.constant 8 : i32
    %15 = vector.broadcast %c8_i32_4 : i32 to vector<8x1xi32>
    %16 = arith.cmpi slt, %14, %15 : vector<8x1xi32>
    %cst_5 = arith.constant 0.000000e+00 : f32
    %17 = vector.broadcast %cst_5 : f32 to vector<8x1xf32>
    %18 = arith.select %16, %8, %17 : vector<8x1xi1>, vector<8x1xf32>
    %19 = vector.shape_cast %18 : vector<8x1xf32> to vector<1x8x1xf32>
    %cst_6 = arith.constant dense<0.000000e+00> : vector<1xf32>
    %20 = vector.multi_reduction <add>, %19, %cst_6 [1, 2] : vector<1x8x1xf32> to vector<1xf32>
    %21 = vector.shape_cast %20 : vector<1xf32> to vector<1x1x1xf32>
    %22 = vector.extract %21[0, 0, 0] : f32 from vector<1x1x1xf32>
    %c0_7 = arith.constant 0 : index
    %c0_8 = arith.constant 0 : index
    %23 = vector.load %arg4[%c0_7, %c0_8] : memref<8x128xf32, #tpu.memory_space<vmem>>, vector<8x128xf32>
    %24 = tpu.iota {dimensions = array<i32: 0>} : vector<8x128xi32>
    %25 = tpu.iota {dimensions = array<i32: 1>} : vector<8x128xi32>
    %c0_i32_9 = arith.constant 0 : i32
    %26 = vector.broadcast %c0_i32_9 : i32 to vector<8x128xi32>
    %27 = arith.cmpi eq, %24, %26 : vector<8x128xi32>
    %c0_i32_10 = arith.constant 0 : i32
    %28 = vector.broadcast %c0_i32_10 : i32 to vector<8x128xi32>
    %29 = arith.cmpi eq, %25, %28 : vector<8x128xi32>
    %30 = arith.andi %27, %29 : vector<8x128xi1>
    %cst_11 = arith.constant 0.000000e+00 : f32
    %31 = vector.broadcast %22 : f32 to vector<8x128xf32>
    %32 = vector.broadcast %cst_11 : f32 to vector<8x128xf32>
    %33 = arith.select %30, %31, %32 : vector<8x128xi1>, vector<8x128xf32>
    %34 = arith.addf %23, %33 : vector<8x128xf32>
    %c0_12 = arith.constant 0 : index
    %c0_13 = arith.constant 0 : index
    %35 = vector.load %arg4[%c0_12, %c0_13] : memref<8x128xf32, #tpu.memory_space<vmem>>, vector<8x128xf32>
    tpu.vector_store %arg4[%c0_12, %c0_13], %34 {strides = array<i32>} : memref<8x128xf32, #tpu.memory_space<vmem>>, vector<8x128xf32>,
    return
  }
  func.func @transform_0(%arg0: i32, %arg1: i32) -> (i32, i32) {
    %c0_i32 = arith.constant 0 : i32
    %c0_i32_0 = arith.constant 0 : i32
    return %arg1, %c0_i32 : i32, i32
  }
  func.func @transform_1(%arg0: i32, %arg1: i32) -> (i32, i32) {
    %c0_i32 = arith.constant 0 : i32
    %c0_i32_0 = arith.constant 0 : i32
    return %arg1, %c0_i32 : i32, i32
  }
  func.func @transform_2(%arg0: i32, %arg1: i32) -> (i32, i32) {
    %c0_i32 = arith.constant 0 : i32
    %c0_i32_0 = arith.constant 0 : i32
    return %arg0, %c0_i32 : i32, i32
  }
}

</mosaic_0001>

<llo_original>
// kernel: tpu_custom_call.1
$region0: #{tpu_custom_call.1}
  #allocation0 [shape = 'u32[]', space=smem, size = 0x4, offset = 0x4, fixed_abs, tag = 'smem constant byte address 0x4 - core index']
  #allocation1 [shape = 'u32[144,128]{1,0:T(1,128)}', space=vmem, size = 0x12000, scoped, tag = 'internal scratch']
  %s0 = inlined_call_operand.hbm [shape: f32[8,32], index: 0, kind: input, shape index: {}]
  %s1 = inlined_call_operand.hbm [shape: f32[8,32], index: 1, kind: input, shape index: {}]
  %s2 = inlined_call_operand.hbm [shape: f32[8,128], index: 2, kind: output, shape index: {}]
  %s3 = sld [smem:[#allocation0]]
  $region30: #{tpu_custom_call.1} parent=0
    _
  %s5 = ssub.s32 1, %s3
  %s6 = scalar_select 0, %s5, %s3
  $region1: #{tpu_custom_call.1} parent=0
    #allocation2 [shape = 'u8[4096]{0}', space=vmem, size = 0x1000, scoped, tag = 'input window, operand 0, single buffered']
    #allocation3 [shape = 's32[1]{0}', space=sflag, size = 0x4, scoped, tag = 'scoped memory for tpu_custom_call.1']
    #allocation4 [shape = 's32[1]{0}', space=sflag, size = 0x4, scoped, tag = 'scoped memory for tpu_custom_call.1']
    #allocation5 [shape = 'u8[4096]{0}', space=vmem, size = 0x1000, scoped, tag = 'input window, operand 1, single buffered']
    #allocation6 [shape = 's32[1]{0}', space=sflag, size = 0x4, scoped, tag = 'scoped memory for tpu_custom_call.1']
    #allocation7 [shape = 'u8[4096]{0}', space=vmem, size = 0x1000, scoped, tag = 'output window, operand 0, single buffered']
    %7 = vsyncpa [#allocation3], 0
    %8 = vsyncpa [#allocation6], 0
    %9 = vsyncpa [#allocation4], 0
    // Predicated region
    $region2: #{tpu_custom_call.1} parent=1 // pred_check
      _
    $region3: #{tpu_custom_call.1} parent=1 // pred_check_branch
      %11 = sbr.rel (0) target = $region5
    $region4: #{tpu_custom_call.1} parent=1 // pred_region
      %s13 = ssub.s32 128, 128
      %14 = vsyncadd [#allocation3], %s13
      %s16 = sshll.u32 [#allocation2], 4
      %s17 = int_to_ptr.vmem [resolvable:$true] %s16
      %19 = dma.hbm_to_vmem [thread:$0]  %s0, 128, %s17, [#allocation3]
    $region5: #{tpu_custom_call.1} parent=1 // pred_fallthru
      _
    // Predicated region
    $region6: #{tpu_custom_call.1} parent=1 // pred_check
      _
    $region7: #{tpu_custom_call.1} parent=1 // pred_check_branch
      %21 = sbr.rel (0) target = $region9
    $region8: #{tpu_custom_call.1} parent=1 // pred_region
      %s23 = ssub.s32 128, 128
      %24 = vsyncadd [#allocation6], %s23
      %s26 = sshll.u32 [#allocation5], 4
      %s27 = int_to_ptr.vmem [resolvable:$true] %s26
      %29 = dma.hbm_to_vmem [thread:$0]  %s1, 128, %s27, [#allocation6]
    $region9: #{tpu_custom_call.1} parent=1 // pred_fallthru
      _
    // Predicated region
    $region10: #{tpu_custom_call.1} parent=1 // pred_check
      _
    $region11: #{tpu_custom_call.1} parent=1 // pred_check_branch
      %31 = sbr.rel (0) target = $region13
    $region12: #{tpu_custom_call.1} parent=1 // pred_region
      %32 = dma.done [#allocation3], 128
    $region13: #{tpu_custom_call.1} parent=1 // pred_fallthru
      _
    // Predicated region
    $region14: #{tpu_custom_call.1} parent=1 // pred_check
      _
    $region15: #{tpu_custom_call.1} parent=1 // pred_check_branch
      %34 = sbr.rel (0) target = $region17
    $region16: #{tpu_custom_call.1} parent=1 // pred_region
      %35 = dma.done [#allocation6], 128
    $region17: #{tpu_custom_call.1} parent=1 // pred_fallthru
      _
    %p36 = scmp.eq.s32.totalorder 0, 0
    // Predicated region
    $region18: #{tpu_custom_call.1} parent=1 // pred_check
      %p37 = pneg %p36
    $region19: #{tpu_custom_call.1} parent=1 // pred_check_branch
      %39 = sbr.rel (%p37) target = $region21
    $region20: #{tpu_custom_call.1} parent=1 // pred_region
      %40 = vst [vmem:[#allocation7] sm:$0xff] 0.0
    $region21: #{tpu_custom_call.1} parent=1 // pred_fallthru
      _
    %v41 = vld [vmem:[#allocation2] sm:$0xff]
    %v42 = vld [vmem:[#allocation5] sm:$0xff]
    %v43 = vsub.f32 %v41, %v42
    %v44 = vmul.f32 %v43, %v43
    %vm45 = vcmask 261120
    %v46 = vsel %vm45, %v44, 0.0
    %47 = vadd.xlane.f32.xlu0 %v46
    %v48 = vpop.xlane.xlu0 %47
    %s49 = sadd.s32 0, 0
    %s50 = smul.u32 %s49, 8
    %v51 = vlaneseq
    %v52 = vshrl.u32 %v51, 7
    %v53 = vstv %s50
    %v54 = vadd.s32 %v53, %v52
    %vm55 = vcmp.lt.s32.totalorder %v54, 8
    %v56 = vsel %vm55, %v48, 0.0
    %vm57 = vcmask 7168
    %v58 = vsel %vm57, %v56, 0.0
    %59 = vadd.xlane.f32.xlu0 %v58
    %v60 = vpop.xlane.xlu0 %59
    %v61 = vrot.slane %v60, 4
    %v62 = vadd.f32 %v60, %v61
    %v63 = vrot.slane %v62, 2
    %v64 = vadd.f32 %v62, %v63
    %v65 = vrot.slane %v64, 1
    %v66 = vadd.f32 %v64, %v65
    %s67 = vtos %v66
    %v68 = vld [vmem:[#allocation7] sm:$0xff]
    %v69 = vlaneseq
    %v70 = vand.u32 %v69, 127
    %vm71 = vcmp.eq.s32.totalorder %v52, 0
    %vm72 = vcmp.eq.s32.totalorder %v70, 0
    %vm73 = vmand %vm71, %vm72
    %v74 = vstv %s67
    %v75 = vsel %vm73, %v74, 0.0
    %v76 = vadd.f32 %v68, %v75
    %77 = vst [vmem:[#allocation7] sm:$0xff] %v76
    // Predicated region
    $region22: #{tpu_custom_call.1} parent=1 // pred_check
      _
    $region23: #{tpu_custom_call.1} parent=1 // pred_check_branch
      %79 = sbr.rel (0) target = $region25
    $region24: #{tpu_custom_call.1} parent=1 // pred_region
      %s81 = ssub.s32 128, 128
      %82 = vsyncadd [#allocation4], %s81
      %s84 = sshll.u32 [#allocation7], 4
      %s85 = int_to_ptr.vmem [resolvable:$true] %s84
      %87 = dma.vmem_to_hbm [thread:$0]  %s85, 128, %s2, [#allocation4]
    $region25: #{tpu_custom_call.1} parent=1 // pred_fallthru
      _
    // Predicated region
    $region26: #{tpu_custom_call.1} parent=1 // pred_check
      _
    $region27: #{tpu_custom_call.1} parent=1 // pred_check_branch
      %89 = sbr.rel (0) target = $region29
    $region28: #{tpu_custom_call.1} parent=1 // pred_region
      %90 = dma.done [#allocation4], 128
    $region29: #{tpu_custom_call.1} parent=1 // pred_fallthru
      _
    %91 = vsyncpa [#allocation3], 1
    %92 = vsyncpa [#allocation6], 1
    %93 = vsyncpa [#allocation4], 1

</llo_original>
